<compile_context>
chip_gen: v5e
topology: v5e:2x2
jax: 0.10.0
libtpu: 0.0.40
codegen_flags: <defaults>
</compile_context>

<pallas_src>
import functools
import math

import numpy as np
import jax
import jax.numpy as jnp
from jax import lax
from jax.experimental import pallas as pl
from jax.experimental.pallas import tpu as pltpu


# --------------------------------------------------------------------------- #
# Chip-aware knobs
# --------------------------------------------------------------------------- #
def _vmem_limit_bytes():
    cap = None
    try:
        cap = getattr(pltpu.get_tpu_info(), "vmem_capacity_bytes", None)
    except Exception:
        cap = None
    if not cap or cap <= 0:
        cap = 64 << 20                    # conservative fallback (v7x per-TC VMEM)
    # 75% of physical, clamped: ~48 MiB on v7x (64 MiB), ~96 MiB on v5e/v6e (128 MiB).
    return int(max(32 << 20, min(cap * 3 // 4, 112 << 20)))


_VMEM_LIMIT = _vmem_limit_bytes()
_ROW_TILE = 512 if _VMEM_LIMIT >= (80 << 20) else 256   # smaller tiles on VMEM-tight v7x


# --------------------------------------------------------------------------- #
# Pallas kernels
# --------------------------------------------------------------------------- #
def _proj1_kernel(x_ref, w_ref, b_ref, o_ref):
    """o = x @ w + b   (f32 x cast to bf16, bf16 w, f32 MXU accumulation)."""
    x = x_ref[...].astype(jnp.bfloat16)
    o_ref[...] = (jnp.dot(x, w_ref[...], preferred_element_type=jnp.float32)
                  + b_ref[...]).astype(o_ref.dtype)


def _proj2_kernel(xf_ref, xb_ref, wf_ref, wb_ref, b_ref, o_ref, *, relu):
    """o = xf @ wf + xb @ wb + b   ( == concat([xf, xb], -1) @ concat([wf; wb]) ).

    xf / xb arrive already in bf16 (hidden sequences are stored in bf16).
    """
    y = (jnp.dot(xf_ref[...], wf_ref[...], preferred_element_type=jnp.float32)
         + jnp.dot(xb_ref[...], wb_ref[...], preferred_element_type=jnp.float32)
         + b_ref[...])
    if relu:
        y = jnp.maximum(y, 0.0)
    o_ref[...] = y.astype(o_ref.dtype)


def _bilstm_kernel(gf_ref, gb_ref, whh_ref, of_ref, ob_ref, state_ref,
                   *, hidden, seq_len, chunk):
    """Both LSTM directions, interleaved, over one time chunk.

    gf_ref    : (Tc, B, 4H) f32  forward pre-activations  x@W_ih_f + b_f   (chunk j)
    gb_ref    : (Tc, B, 4H) f32  backward pre-activations x@W_ih_b + b_b   (chunk Nc-1-j)
    whh_ref   : (2, H, 4H)  bf16 recurrent weights, [0]=fwd, [1]=bwd (transposed)
    of_ref    : (Tc, B, H)  bf16 forward hidden states    (chunk j)
    ob_ref    : (Tc, B, H)  bf16 backward hidden states   (chunk Nc-1-j)
    state_ref : (4, B, H)   f32  VMEM scratch: [h_f, c_f, h_b, c_b], carried across chunks
    """
    H, T, Tc = hidden, seq_len, chunk
    j = pl.program_id(0)
    nc = pl.num_programs(0)

    @pl.when(j == 0)
    def _():
        state_ref[...] = jnp.zeros_like(state_ref)

    whh_f = whh_ref[0]                       # (H, 4H) bf16, resident for the chunk
    whh_b = whh_ref[1]

    base_f = j * Tc                          # first global time step of the fwd chunk
    base_b = (nc - 1 - j) * Tc               # first global time step of the bwd chunk

    def gates_act(pre):
        # Per-gate slices fused with their nonlinearity (keeps live f32 state small
        # at production B; gate order i, f, g, o as in PyTorch).
        i_g = jax.nn.sigmoid(pre[:, 0 * H:1 * H])
        f_g = jax.nn.sigmoid(pre[:, 1 * H:2 * H])
        g_g = jnp.tanh(pre[:, 2 * H:3 * H])
        o_g = jax.nn.sigmoid(pre[:, 3 * H:4 * H])
        return i_g, f_g, g_g, o_g

    def step(t, carry):
        h_f, c_f, h_b, c_b = carry                     # (B, H) f32 each
        tb = Tc - 1 - t                                # bwd local index (descending time)

        # Two independent dependency chains -> MXU / EUP / VALU work overlaps.
        pre_f = gf_ref[t] + jnp.dot(h_f.astype(jnp.bfloat16), whh_f,
                                    preferred_element_type=jnp.float32)
        pre_b = gb_ref[tb] + jnp.dot(h_b.astype(jnp.bfloat16), whh_b,
                                     preferred_element_type=jnp.float32)
        i_f, f_f, g_f, o_f = gates_act(pre_f)
        i_b, f_b, g_b, o_b = gates_act(pre_b)
        c_f_new = f_f * c_f + i_f * g_f
        h_f_new = o_f * jnp.tanh(c_f_new)
        c_b_new = f_b * c_b + i_b * g_b
        h_b_new = o_b * jnp.tanh(c_b_new)

        of_ref[t] = h_f_new.astype(of_ref.dtype)       # OOB rows of a ragged last
        ob_ref[tb] = h_b_new.astype(ob_ref.dtype)      # chunk are masked on store.

        # Ragged last chunk: don't let padded (garbage) time steps touch the carry.
        valid_f = (base_f + t) < T
        valid_b = (base_b + tb) < T
        h_f = jnp.where(valid_f, h_f_new, h_f)
        c_f = jnp.where(valid_f, c_f_new, c_f)
        h_b = jnp.where(valid_b, h_b_new, h_b)
        c_b = jnp.where(valid_b, c_b_new, c_b)
        return h_f, c_f, h_b, c_b

    carry0 = (state_ref[0], state_ref[1], state_ref[2], state_ref[3])
    h_f, c_f, h_b, c_b = lax.fori_loop(0, Tc, step, carry0, unroll=2)
    state_ref[0] = h_f
    state_ref[1] = c_f
    state_ref[2] = h_b
    state_ref[3] = c_b


# --------------------------------------------------------------------------- #
# pallas_call wrappers
# --------------------------------------------------------------------------- #
def linear_proj1(x, w, b):
    """(rows, Din) @ (Din, Dout) + (1, Dout); fixed cdiv row tile, 'parallel' grid."""
    rows, din = x.shape
    dout = w.shape[1]
    tr = min(rows, _ROW_TILE)
    cost = pl.CostEstimate(
        flops=2 * rows * din * dout, transcendentals=0,
        bytes_accessed=(rows * din + rows * dout) * 4 + din * dout * 2)
    return pl.pallas_call(
        _proj1_kernel,
        out_shape=jax.ShapeDtypeStruct((rows, dout), jnp.float32),
        grid=(pl.cdiv(rows, tr),),
        in_specs=[
            pl.BlockSpec((tr, din), lambda i: (i, 0)),
            pl.BlockSpec((din, dout), lambda i: (0, 0)),
            pl.BlockSpec((1, dout), lambda i: (0, 0)),
        ],
        out_specs=pl.BlockSpec((tr, dout), lambda i: (i, 0)),
        compiler_params=pltpu.CompilerParams(
            dimension_semantics=("parallel",), vmem_limit_bytes=_VMEM_LIMIT),
        cost_estimate=cost,
    )(x, w, b)


def linear_proj2(xf, xb, wf, wb, b, *, relu):
    """xf @ wf + xb @ wb + b (optionally ReLU); xf/xb bf16; fixed cdiv row tile."""
    rows, din_f = xf.shape
    din_b = xb.shape[1]
    dout = wf.shape[1]
    tr = min(rows, _ROW_TILE)
    cost = pl.CostEstimate(
        flops=2 * rows * (din_f + din_b) * dout, transcendentals=0,
        bytes_accessed=rows * (din_f + din_b) * 2 + rows * dout * 4
                       + (din_f + din_b) * dout * 2)
    return pl.pallas_call(
        functools.partial(_proj2_kernel, relu=relu),
        out_shape=jax.ShapeDtypeStruct((rows, dout), jnp.float32),
        grid=(pl.cdiv(rows, tr),),
        in_specs=[
            pl.BlockSpec((tr, din_f), lambda i: (i, 0)),
            pl.BlockSpec((tr, din_b), lambda i: (i, 0)),
            pl.BlockSpec((din_f, dout), lambda i: (0, 0)),
            pl.BlockSpec((din_b, dout), lambda i: (0, 0)),
            pl.BlockSpec((1, dout), lambda i: (0, 0)),
        ],
        out_specs=pl.BlockSpec((tr, dout), lambda i: (i, 0)),
        compiler_params=pltpu.CompilerParams(
            dimension_semantics=("parallel",), vmem_limit_bytes=_VMEM_LIMIT),
        cost_estimate=cost,
    )(xf, xb, wf, wb, b)


def bilstm_layer(gates_tb8h, whh_stacked, hidden, time_chunk):
    """Run both directions of one bi-LSTM layer; returns (fwd, bwd) each (T, B, H) bf16.

    The grid iterates over time chunks ("arbitrary": h/c carried in VMEM scratch).
    The forward direction walks chunks 0..Nc-1, the backward direction walks
    chunks Nc-1..0 in the same grid sweep, interleaved inside the kernel.
    """
    T, B, g8 = gates_tb8h.shape
    H = hidden
    assert g8 == 8 * H
    assert (4 * H) % 128 == 0, "hidden size must be a multiple of 32"
    tc = max(1, min(int(time_chunk), T))
    nc = pl.cdiv(T, tc)

    kernel = functools.partial(_bilstm_kernel, hidden=H, seq_len=T, chunk=tc)
    return pl.pallas_call(
        kernel,
        out_shape=(jax.ShapeDtypeStruct((T, B, H), jnp.bfloat16),
                   jax.ShapeDtypeStruct((T, B, H), jnp.bfloat16)),
        grid=(nc,),
        in_specs=[
            # forward gates: chunk j, columns [0:4H]
            pl.BlockSpec((tc, B, 4 * H), lambda j: (j, 0, 0)),
            # backward gates: chunk Nc-1-j, columns [4H:8H]
            pl.BlockSpec((tc, B, 4 * H), lambda j: (nc - 1 - j, 0, 1)),
            # both directions' recurrent weights, resident
            pl.BlockSpec((2, H, 4 * H), lambda j: (0, 0, 0)),
        ],
        out_specs=(
            pl.BlockSpec((tc, B, H), lambda j: (j, 0, 0)),
            pl.BlockSpec((tc, B, H), lambda j: (nc - 1 - j, 0, 0)),
        ),
        scratch_shapes=[pltpu.VMEM((4, B, H), jnp.float32)],   # h_f, c_f, h_b, c_b
        compiler_params=pltpu.CompilerParams(
            dimension_semantics=("arbitrary",),                # chunks carry state
            vmem_limit_bytes=_VMEM_LIMIT),
    )(gates_tb8h, gates_tb8h, whh_stacked)


def pit_model_forward(packed, x_btf, *, time_chunk=64):
    """Matches PitModel.forward.  x_btf: (B, T, F) batch_first."""
    B, T, F = x_btf.shape
    H = packed["hidden"]
    f_pad = packed["feat_pad"]
    x_tbf = jnp.transpose(x_btf, (1, 0, 2)).astype(jnp.float32)          # (T, B, F)
    if f_pad > F:                                                        # MXU-aligned K
        x_tbf = jnp.pad(x_tbf, ((0, 0), (0, 0), (0, f_pad - F)))
    hf = hb = None
    for li, layer in enumerate(packed["layers"]):
        if li == 0:
            gates = linear_proj1(x_tbf.reshape(T * B, f_pad),
                                 layer["wih8_t"], layer["b8"])           # (T*B, 8H) f32
        else:
            gates = linear_proj2(hf.reshape(T * B, H), hb.reshape(T * B, H),
                                 layer["wih8_f_t"], layer["wih8_b_t"],
                                 layer["b8"], relu=False)                # (T*B, 8H) f32
        hf, hb = bilstm_layer(gates.reshape(T, B, 8 * H), layer["whh_st"],
                              H, time_chunk)                             # (T, B, H) bf16
        # nn.LSTM inter-layer dropout (p=0.5) is train-only; inference = identity.
    y = linear_proj2(hf.reshape(T * B, H), hb.reshape(T * B, H),
                     packed["linear"]["w_f_t"], packed["linear"]["w_b_t"],
                     packed["linear"]["b"], relu=True)                   # (T*B, O) f32
    out_dim = y.shape[-1]
    return jnp.transpose(y.reshape(T, B, out_dim), (1, 0, 2))            # (B, T, O)


# --------------------------------------------------------------------------- #
# Parameter init (PyTorch-style uniform(-1/sqrt(fan), 1/sqrt(fan))) and packing
# --------------------------------------------------------------------------- #
def init_params(key, num_features, hidden, num_layers, out_dim):
    H = hidden
    k_lstm = 1.0 / math.sqrt(H)
    layers = []
    for l in range(num_layers):
        in_dim = num_features if l == 0 else 2 * H
        dirs = {}
        for dname in ("fwd", "bwd"):
            key, k1, k2, k3, k4 = jax.random.split(key, 5)
            wih = jax.random.uniform(k1, (4 * H, in_dim), jnp.float32, -k_lstm, k_lstm)
            whh = jax.random.uniform(k2, (4 * H, H), jnp.float32, -k_lstm, k_lstm)
            bih = jax.random.uniform(k3, (4 * H,), jnp.float32, -k_lstm, k_lstm)
            bhh = jax.random.uniform(k4, (4 * H,), jnp.float32, -k_lstm, k_lstm)
            dirs[dname] = {
                "wih_t": wih.T.astype(jnp.bfloat16),       # (in_dim, 4H)
                "whh_t": whh.T.astype(jnp.bfloat16),       # (H, 4H)
                "b": (bih + bhh).reshape(1, 4 * H),        # f32, gate order i,f,g,o
            }
        layers.append(dirs)
    key, k1, k2 = jax.random.split(key, 3)
    k_lin = 1.0 / math.sqrt(2 * H)
    w = jax.random.uniform(k1, (out_dim, 2 * H), jnp.float32, -k_lin, k_lin)
    b = jax.random.uniform(k2, (out_dim,), jnp.float32, -k_lin, k_lin)
    return {"hidden": H, "layers": layers,
            "linear": {"w_t": w.T.astype(jnp.bfloat16),    # (2H, O)
                       "b": b.reshape(1, out_dim)}}


def pack_params(params):
    """Repack per-direction weights into the fused kernel layout."""
    H = params["hidden"]
    feat = params["layers"][0]["fwd"]["wih_t"].shape[0]
    feat_pad = ((feat + 127) // 128) * 128            # layer-0 K padded to 128-multiple
    packed_layers = []
    for l, dirs in enumerate(params["layers"]):
        f, r = dirs["fwd"], dirs["bwd"]
        wih8_t = jnp.concatenate([f["wih_t"], r["wih_t"]], axis=1)    # (Din, 8H) bf16
        entry = {
            "b8": jnp.concatenate([f["b"], r["b"]], axis=1),          # (1, 8H) f32
            "whh_st": jnp.stack([f["whh_t"], r["whh_t"]], axis=0),    # (2, H, 4H) bf16
        }
        if l == 0:
            entry["wih8_t"] = jnp.pad(wih8_t, ((0, feat_pad - feat), (0, 0)))
        else:   # split the 2H contraction into the fwd-half and bwd-half rows
            entry["wih8_f_t"] = wih8_t[:H]
            entry["wih8_b_t"] = wih8_t[H:]
        packed_layers.append(entry)
    w_t = params["linear"]["w_t"]
    return {"hidden": H, "feat_dim": feat, "feat_pad": feat_pad,
            "layers": packed_layers,
            "linear": {"w_f_t": w_t[:H], "w_b_t": w_t[H:],
                       "b": params["linear"]["b"]}}


# --------------------------------------------------------------------------- #
# Pure-JAX reference (standard per-step bi-LSTM; same bf16 weights / f32 accum)
# --------------------------------------------------------------------------- #
def _lstm_dir_ref(x_tbd, wih_t, whh_t, b, H, reverse):
    xs = x_tbd[::-1] if reverse else x_tbd
    B = x_tbd.shape[1]

    def step(carry, x_t):
        h, c = carry
        gates = (jnp.dot(x_t.astype(jnp.bfloat16), wih_t, preferred_element_type=jnp.float32)
                 + jnp.dot(h.astype(jnp.bfloat16), whh_t, preferred_element_type=jnp.float32)
                 + b)
        i = jax.nn.sigmoid(gates[:, 0 * H:1 * H])
        f = jax.nn.sigmoid(gates[:, 1 * H:2 * H])
        g = jnp.tanh(gates[:, 2 * H:3 * H])
        o = jax.nn.sigmoid(gates[:, 3 * H:4 * H])
        c = f * c + i * g
        h = o * jnp.tanh(c)
        return (h, c), h

    init = (jnp.zeros((B, H), jnp.float32), jnp.zeros((B, H), jnp.float32))
    _, hs = lax.scan(step, init, xs)
    return hs[::-1] if reverse else hs


def pit_model_forward_ref(params, x_btf):
    B, T, _ = x_btf.shape
    H = params["hidden"]
    h = jnp.transpose(x_btf, (1, 0, 2)).astype(jnp.float32)
    for dirs in params["layers"]:
        fwd = _lstm_dir_ref(h, dirs["fwd"]["wih_t"], dirs["fwd"]["whh_t"],
                            dirs["fwd"]["b"], H, False)
        bwd = _lstm_dir_ref(h, dirs["bwd"]["wih_t"], dirs["bwd"]["whh_t"],
                            dirs["bwd"]["b"], H, True)
        h = jnp.concatenate([fwd, bwd], axis=-1)
    flat = jnp.transpose(h, (1, 0, 2)).reshape(B * T, 2 * H)
    out = jnp.maximum(
        jnp.dot(flat.astype(jnp.bfloat16), params["linear"]["w_t"],
                preferred_element_type=jnp.float32) + params["linear"]["b"], 0.0)
    return out.reshape(B, T, -1)


# --------------------------------------------------------------------------- #
if __name__ == "__main__":
    # Small, architecture-consistent sizes (original: NUM_FEATURES=129, HIDDEN=512).
    NUM_FEATURES = 16
    HIDDEN_SIZE = 32
    NUM_LAYERS = 3
    NUM_SOURCES = 2
    OUTPUT_DIMENSIONS = NUM_FEATURES * NUM_SOURCES   # 32
    BATCH = 2
    SEQ = 8
    TIME_CHUNK = 4   # 2 time chunks -> exercises cross-chunk h/c carry

    key = jax.random.PRNGKey(0)
    key, pkey, xkey = jax.random.split(key, 3)
    params = init_params(pkey, NUM_FEATURES, HIDDEN_SIZE, NUM_LAYERS, OUTPUT_DIMENSIONS)
    packed = pack_params(params)
    x = jax.random.normal(xkey, (BATCH, SEQ, NUM_FEATURES), jnp.float32)

    out = jax.block_until_ready(pit_model_forward(packed, x, time_chunk=TIME_CHUNK))
    assert out.shape == (BATCH, SEQ, OUTPUT_DIMENSIONS), out.shape

    ref = jax.block_until_ready(pit_model_forward_ref(params, x))
    np.testing.assert_allclose(np.asarray(out), np.asarray(ref), rtol=2e-3, atol=2e-3)

    print("KERNEL_OK")
</pallas_src>

<mosaic_0001>
module attributes {stable_mosaic.version = 11 : i64} {
  func.func @_proj1_kernel(%arg0: i32, %arg1: memref<16x128xf32, #tpu.memory_space<vmem>>, %arg2: memref<128x256xbf16, #tpu.memory_space<vmem>>, %arg3: memref<1x256xf32, #tpu.memory_space<vmem>>, %arg4: memref<16x256xf32, #tpu.memory_space<vmem>>) attributes {dimension_semantics = [#tpu.dimension_semantics<parallel>], iteration_bounds = array<i64: 1>, scalar_prefetch = 0 : i64, scratch_operands = 0 : i64, tpu.core_type = #tpu.core_type<tc>, window_params = [{transform_indices = @transform_0, window_bounds = array<i64: 16, 128>}, {pipeline_mode = #tpu.pipeline_mode<synchronous>, transform_indices = @transform_1, window_bounds = array<i64: 128, 256>}, {pipeline_mode = #tpu.pipeline_mode<synchronous>, transform_indices = @transform_2, window_bounds = array<i64: 1, 256>}, {transform_indices = @transform_3, window_bounds = array<i64: 16, 256>}]} {
    %c0 = arith.constant 0 : index
    %c0_0 = arith.constant 0 : index
    %0 = vector.load %arg1[%c0, %c0_0] : memref<16x128xf32, #tpu.memory_space<vmem>>, vector<16x128xf32>
    %1 = arith.truncf %0 : vector<16x128xf32> to vector<16x128xbf16>
    %c0_1 = arith.constant 0 : index
    %c0_2 = arith.constant 0 : index
    %2 = vector.load %arg2[%c0_1, %c0_2] : memref<128x256xbf16, #tpu.memory_space<vmem>>, vector<128x256xbf16>
    %cst = arith.constant dense<0.000000e+00> : vector<16x256xf32>
    %3 = tpu.matmul %1, %2, %cst {dimension_numbers = #tpu.dot_dimension_numbers<[1], [0], [0], [1], [0, 0, 1, 1], [], []>} : vector<16x128xbf16>, vector<128x256xbf16>, vector<16x256xf32> -> vector<16x256xf32>
    %c0_3 = arith.constant 0 : index
    %c0_4 = arith.constant 0 : index
    %4 = vector.load %arg3[%c0_3, %c0_4] : memref<1x256xf32, #tpu.memory_space<vmem>>, vector<1x256xf32>
    %5 = vector.broadcast %4 : vector<1x256xf32> to vector<16x256xf32>
    %6 = arith.addf %3, %5 : vector<16x256xf32>
    %c0_5 = arith.constant 0 : index
    %c0_6 = arith.constant 0 : index
    %7 = vector.load %arg4[%c0_5, %c0_6] : memref<16x256xf32, #tpu.memory_space<vmem>>, vector<16x256xf32>
    tpu.vector_store %arg4[%c0_5, %c0_6], %6 {strides = array<i32>} : memref<16x256xf32, #tpu.memory_space<vmem>>, vector<16x256xf32>,
    return
  }
  func.func @transform_0(%arg0: i32) -> (i32, i32) {
    %c0_i32 = arith.constant 0 : i32
    %c0_i32_0 = arith.constant 0 : i32
    return %arg0, %c0_i32 : i32, i32
  }
  func.func @transform_1(%arg0: i32) -> (i32, i32) {
    %c0_i32 = arith.constant 0 : i32
    %c0_i32_0 = arith.constant 0 : i32
    %c0_i32_1 = arith.constant 0 : i32
    return %c0_i32, %c0_i32_0 : i32, i32
  }
  func.func @transform_2(%arg0: i32) -> (i32, i32) {
    %c0_i32 = arith.constant 0 : i32
    %c0_i32_0 = arith.constant 0 : i32
    %c0_i32_1 = arith.constant 0 : i32
    return %c0_i32, %c0_i32_0 : i32, i32
  }
  func.func @transform_3(%arg0: i32) -> (i32, i32) {
    %c0_i32 = arith.constant 0 : i32
    %c0_i32_0 = arith.constant 0 : i32
    return %arg0, %c0_i32 : i32, i32
  }
}

</mosaic_0001>

<llo_original>
// kernel: tpu_custom_call.1
$region0: #{tpu_custom_call.1}
  #allocation0 [shape = 'u32[]', space=smem, size = 0x4, offset = 0x4, fixed_abs, tag = 'smem constant byte address 0x4 - core index']
  #allocation1 [shape = 'u32[72,128]{1,0:T(1,128)}', space=vmem, size = 0x9000, scoped, tag = 'internal scratch']
  %s0 = inlined_call_operand.hbm [shape: f32[16,128], index: 0, kind: input, shape index: {}]
  %s1 = inlined_call_operand.hbm [shape: bf16[128,256], index: 1, kind: input, shape index: {}]
  %s2 = inlined_call_operand.hbm [shape: f32[1,256], index: 2, kind: input, shape index: {}]
  %s3 = inlined_call_operand.hbm [shape: f32[16,256], index: 3, kind: output, shape index: {}]
  %s4 = sld [smem:[#allocation0]]
  $region34: #{tpu_custom_call.1} parent=0
    _
  %s6 = ssub.s32 1, %s4
  %s7 = scalar_select 0, %s6, %s4
  $region1: #{tpu_custom_call.1} parent=0
    #allocation2 [shape = 'u8[8192]{0}', space=vmem, size = 0x2000, scoped, tag = 'input window, operand 0, single buffered']
    #allocation3 [shape = 's32[1]{0}', space=sflag, size = 0x4, scoped, tag = 'scoped memory for tpu_custom_call.1']
    #allocation4 [shape = 's32[1]{0}', space=sflag, size = 0x4, scoped, tag = 'scoped memory for tpu_custom_call.1']
    #allocation5 [shape = 'u8[65536]{0}', space=vmem, size = 0x10000, scoped, tag = 'input window, operand 1, single buffered']
    #allocation6 [shape = 's32[1]{0}', space=sflag, size = 0x4, scoped, tag = 'scoped memory for tpu_custom_call.1']
    #allocation7 [shape = 'u8[1024]{0}', space=vmem, size = 0x400, scoped, tag = 'input window, operand 2, single buffered']
    #allocation8 [shape = 'u8[16384]{0}', space=vmem, size = 0x4000, scoped, tag = 'output window, operand 0, single buffered']
    %8 = vsyncpa [#allocation3], 0
    %9 = vsyncpa [#allocation6], 0
    %10 = vsyncpa [#allocation4], 0
    // Predicated region
    $region2: #{tpu_custom_call.1} parent=1 // pred_check
      _
    $region3: #{tpu_custom_call.1} parent=1 // pred_check_branch
      %12 = sbr.rel (0) target = $region5
    $region4: #{tpu_custom_call.1} parent=1 // pred_region
      %14 = vsyncadd [#allocation3], 0
      %s15 = sshll.u32 %s0, 4
      %s16 = int_to_ptr.hbm [resolvable:$true] %s15
      %s17 = sshll.u32 [#allocation2], 4
      %s18 = int_to_ptr.vmem [resolvable:$true] %s17
      %23 = dma.hbm_to_vmem [thread:$0]  %s16, 256, %s18, [#allocation3], 128, 128, 8
    $region5: #{tpu_custom_call.1} parent=1 // pred_fallthru
      _
    // Predicated region
    $region6: #{tpu_custom_call.1} parent=1 // pred_check
      _
    $region7: #{tpu_custom_call.1} parent=1 // pred_check_branch
      %25 = sbr.rel (0) target = $region9
    $region8: #{tpu_custom_call.1} parent=1 // pred_region
      %27 = vsyncadd [#allocation6], 0
      %s28 = sshll.u32 %s1, 4
      %s29 = int_to_ptr.hbm [resolvable:$true] %s28
      %s30 = sshll.u32 [#allocation5], 4
      %s31 = int_to_ptr.vmem [resolvable:$true] %s30
      %36 = dma.hbm_to_vmem [thread:$0]  %s29, 2048, %s31, [#allocation6], 128, 128, 8
    $region9: #{tpu_custom_call.1} parent=1 // pred_fallthru
      _
    // Predicated region
    $region10: #{tpu_custom_call.1} parent=1 // pred_check
      _
    $region11: #{tpu_custom_call.1} parent=1 // pred_check_branch
      %38 = sbr.rel (0) target = $region13
    $region12: #{tpu_custom_call.1} parent=1 // pred_region
      %40 = vsyncadd [#allocation6], 0
      %s42 = sshll.u32 %s2, 4
      %s43 = int_to_ptr.hbm [resolvable:$true] %s42
      %s44 = sshll.u32 [#allocation7], 4
      %s45 = int_to_ptr.vmem [resolvable:$true] %s44
      %47 = dma.hbm_to_vmem [thread:$0]  %s43, 32, %s45, [#allocation6]
    $region13: #{tpu_custom_call.1} parent=1 // pred_fallthru
      _
    // Predicated region
    $region14: #{tpu_custom_call.1} parent=1 // pred_check
      _
    $region15: #{tpu_custom_call.1} parent=1 // pred_check_branch
      %49 = sbr.rel (0) target = $region17
    $region16: #{tpu_custom_call.1} parent=1 // pred_region
      %51 = dma.done [#allocation3], 256
    $region17: #{tpu_custom_call.1} parent=1 // pred_fallthru
      _
    // Predicated region
    $region18: #{tpu_custom_call.1} parent=1 // pred_check
      _
    $region19: #{tpu_custom_call.1} parent=1 // pred_check_branch
      %53 = sbr.rel (0) target = $region21
    $region20: #{tpu_custom_call.1} parent=1 // pred_region
      %55 = dma.done [#allocation6], 2048
    $region21: #{tpu_custom_call.1} parent=1 // pred_fallthru
      _
    // Predicated region
    $region22: #{tpu_custom_call.1} parent=1 // pred_check
      _
    $region23: #{tpu_custom_call.1} parent=1 // pred_check_branch
      %57 = sbr.rel (0) target = $region25
    $region24: #{tpu_custom_call.1} parent=1 // pred_region
      %59 = dma.done [#allocation6], 32
    $region25: #{tpu_custom_call.1} parent=1 // pred_fallthru
      _
    %v60 = vld [vmem:[#allocation2] sm:$0xff]
    %v61 = vld [vmem:[#allocation2 + $0x8] sm:$0xff]
    %v62 = vpack.c.bf16 %v61, %v60
    %v63 = vld [vmem:[#allocation5] sm:$0xff]
    %v64 = vld [vmem:[#allocation5 + $0x8] sm:$0xff]
    %v65 = vld [vmem:[#allocation5 + $0x10] sm:$0xff]
    %v66 = vld [vmem:[#allocation5 + $0x18] sm:$0xff]
    %v67 = vld [vmem:[#allocation5 + $0x20] sm:$0xff]
    %v68 = vld [vmem:[#allocation5 + $0x28] sm:$0xff]
    %v69 = vld [vmem:[#allocation5 + $0x30] sm:$0xff]
    %v70 = vld [vmem:[#allocation5 + $0x38] sm:$0xff]
    %v71 = vld [vmem:[#allocation5 + $0x40] sm:$0xff]
    %v72 = vld [vmem:[#allocation5 + $0x48] sm:$0xff]
    %v73 = vld [vmem:[#allocation5 + $0x50] sm:$0xff]
    %v74 = vld [vmem:[#allocation5 + $0x58] sm:$0xff]
    %v75 = vld [vmem:[#allocation5 + $0x60] sm:$0xff]
    %v76 = vld [vmem:[#allocation5 + $0x68] sm:$0xff]
    %v77 = vld [vmem:[#allocation5 + $0x70] sm:$0xff]
    %v78 = vld [vmem:[#allocation5 + $0x78] sm:$0xff]
    %v79 = vld [vmem:[#allocation7] sm:$0x3]
    %v81 = vperm.slane %v79, 0
    %v82 = vperm.slane %v79, 1
    %v101 = vunpack.c.l.b16 %v63
    %v102 = vunpack.c.h.b16 %v63
    %v103 = vunpack.c.l.b16 %v64
    %v104 = vunpack.c.h.b16 %v64
    %v105 = vunpack.c.l.b16 %v65
    %v106 = vunpack.c.h.b16 %v65
    %v107 = vunpack.c.l.b16 %v66
    %v108 = vunpack.c.h.b16 %v66
    %v109 = vunpack.c.l.b16 %v67
    %v110 = vunpack.c.h.b16 %v67
    %v111 = vunpack.c.l.b16 %v68
    %v112 = vunpack.c.h.b16 %v68
    %v113 = vunpack.c.l.b16 %v69
    %v114 = vunpack.c.h.b16 %v69
    %v115 = vunpack.c.l.b16 %v70
    %v116 = vunpack.c.h.b16 %v70
    %v117 = vunpack.c.l.b16 %v71
    %v118 = vunpack.c.h.b16 %v71
    %v119 = vunpack.c.l.b16 %v72
    %v120 = vunpack.c.h.b16 %v72
    %v121 = vunpack.c.l.b16 %v73
    %v122 = vunpack.c.h.b16 %v73
    %v123 = vunpack.c.l.b16 %v74
    %v124 = vunpack.c.h.b16 %v74
    %v125 = vunpack.c.l.b16 %v75
    %v126 = vunpack.c.h.b16 %v75
    %v127 = vunpack.c.l.b16 %v76
    %v128 = vunpack.c.h.b16 %v76
    %v129 = vunpack.c.l.b16 %v77
    %v130 = vunpack.c.h.b16 %v77
    %v131 = vunpack.c.l.b16 %v78
    %v132 = vunpack.c.h.b16 %v78
    %v133 = vpack.c.b16 %v103, %v101
    %v134 = vpack.c.b16 %v104, %v102
    %v135 = vpack.c.b16 %v107, %v105
    %v136 = vpack.c.b16 %v108, %v106
    %v137 = vpack.c.b16 %v111, %v109
    %v138 = vpack.c.b16 %v112, %v110
    %v139 = vpack.c.b16 %v115, %v113
    %v140 = vpack.c.b16 %v116, %v114
    %v141 = vpack.c.b16 %v119, %v117
    %v142 = vpack.c.b16 %v120, %v118
    %v143 = vpack.c.b16 %v123, %v121
    %v144 = vpack.c.b16 %v124, %v122
    %v145 = vpack.c.b16 %v127, %v125
    %v146 = vpack.c.b16 %v128, %v126
    %v147 = vpack.c.b16 %v131, %v129
    %v148 = vpack.c.b16 %v132, %v130
    %165 = vmatpush.bf16.msra.mxu0 %v147
    %166 = vmatpush.bf16.msra.mxu0 %v145
    %167 = vmatpush.bf16.msra.mxu0 %v143
    %168 = vmatpush.bf16.msra.mxu0 %v141
    %169 = vmatpush.bf16.msra.mxu0 %v139
    %170 = vmatpush.bf16.msra.mxu0 %v137
    %171 = vmatpush.bf16.msra.mxu0 %v135
    %172 = vmatpush.bf16.msra.mxu0 %v133
    %173 = vmatmul.bf16.gmra.mxu0 %v62
    %v174 = vpop.f32.mrf.mxu0
    %v175 = vadd.f32 %v81, %v174
    %v176 = vpop.f32.mrf.mxu0
    %v177 = vadd.f32 %v81, %v176
    %178 = vdwg.mxu0
    %179 = vmatpush.bf16.msra.mxu0 %v148
    %180 = vmatpush.bf16.msra.mxu0 %v146
    %181 = vmatpush.bf16.msra.mxu0 %v144
    %182 = vmatpush.bf16.msra.mxu0 %v142
    %183 = vmatpush.bf16.msra.mxu0 %v140
    %184 = vmatpush.bf16.msra.mxu0 %v138
    %185 = vmatpush.bf16.msra.mxu0 %v136
    %186 = vmatpush.bf16.msra.mxu0 %v134
    %187 = vmatmul.bf16.gmra.mxu0 %v62
    %v188 = vpop.f32.mrf.mxu0
    %v189 = vadd.f32 %v82, %v188
    %v190 = vpop.f32.mrf.mxu0
    %v191 = vadd.f32 %v82, %v190
    %192 = vdwg.mxu0
    %193 = vst [vmem:[#allocation8] sm:$0xff] %v175
    %194 = vst [vmem:[#allocation8 + $0x8] sm:$0xff] %v189
    %195 = vst [vmem:[#allocation8 + $0x10] sm:$0xff] %v177
    %196 = vst [vmem:[#allocation8 + $0x18] sm:$0xff] %v191
    // Predicated region
    $region26: #{tpu_custom_call.1} parent=1 // pred_check
      _
    $region27: #{tpu_custom_call.1} parent=1 // pred_check_branch
      %198 = sbr.rel (0) target = $region29
    $region28: #{tpu_custom_call.1} parent=1 // pred_region
      %200 = vsyncadd [#allocation4], 0
      %s201 = sshll.u32 [#allocation8], 4
      %s202 = int_to_ptr.vmem [resolvable:$true] %s201
      %s203 = sshll.u32 %s3, 4
      %s204 = int_to_ptr.hbm [resolvable:$true] %s203
      %209 = dma.vmem_to_hbm [thread:$0]  %s202, 512, %s204, [#allocation4], 256, 256, 16
    $region29: #{tpu_custom_call.1} parent=1 // pred_fallthru
      _
    // Predicated region
    $region30: #{tpu_custom_call.1} parent=1 // pred_check
      _
    $region31: #{tpu_custom_call.1} parent=1 // pred_check_branch
      %211 = sbr.rel (0) target = $region33
    $region32: #{tpu_custom_call.1} parent=1 // pred_region
      %213 = dma.done [#allocation4], 512
    $region33: #{tpu_custom_call.1} parent=1 // pred_fallthru
      _
    %214 = vsyncpa [#allocation3], 1
    %215 = vsyncpa [#allocation6], 1
    %216 = vsyncpa [#allocation4], 1

</llo_original>
